<compile_context>
chip_gen: v6e
topology: v6e:2x2x1
jax: 0.10.0
libtpu: 0.0.40
codegen_flags: <defaults>
</compile_context>

<pallas_src>
import functools

import jax
import jax.numpy as jnp
from jax.experimental import pallas as pl
from jax.experimental.pallas import tpu as pltpu

BN_EPS = 1e-5


def _round_up(x, n):
    return ((x + n - 1) // n) * n


# ---------------------------------------------------------------------------
# Fused pass: conv (single folded-K GEMM) + bias + ReLU + per-tile BN partials
# ---------------------------------------------------------------------------
def _conv_relu_stats_kernel(x_ref, w_ref, b_ref, y_ref, stats_ref,
                            *, needs_mask, tm, m_valid):
    # x_ref    : (K, TM)           transposed im2col tile (K = KH*KW*C_in)
    # w_ref    : (C_out, K)        folded, transposed weights
    # b_ref    : (C_out, 1)        bias
    # y_ref    : (C_out, TM)       conv + bias + ReLU output tile (lane-dense)
    # stats_ref: (1, 2, C_out, 1)  per-tile [sum(y), sum(y*y)] over valid columns
    y = jnp.dot(w_ref[...], x_ref[...], preferred_element_type=jnp.float32)
    y = jnp.maximum(y + b_ref[...], 0.0)
    y_ref[...] = y.astype(y_ref.dtype)

    def _write_stats(yv):
        stats_ref[0, 0] = jnp.sum(yv, axis=1, keepdims=True)
        stats_ref[0, 1] = jnp.sum(yv * yv, axis=1, keepdims=True)

    if needs_mask:
        is_last = pl.program_id(0) == pl.num_programs(0) - 1

        @pl.when(jnp.logical_not(is_last))
        def _():
            _write_stats(y)                       # unmasked fast path

        @pl.when(is_last)
        def _():                                  # mask padded M columns (last tile only)
            col = (pl.program_id(0) * tm
                   + jax.lax.broadcasted_iota(jnp.int32, (1, tm), 1))
            _write_stats(jnp.where(col < m_valid, y, 0.0))
    else:
        _write_stats(y)


# ---------------------------------------------------------------------------
# XLA glue: im2col from the (C, N, H, W) carry layout (no relayout needed)
# ---------------------------------------------------------------------------
def _im2col_cnhw(x_cnhw, kh, kw, stride, padding, matmul_dtype):
    """(C_in, N, H, W) -> (K, M) patches; K order = (tap, c_in), M order = (n, ho, wo)."""
    c_in, n, h, w = x_cnhw.shape
    x_cnhw = x_cnhw.astype(matmul_dtype)          # cast BEFORE pad/stack (bf16 mode)
    xp = jnp.pad(x_cnhw, ((0, 0), (0, 0), (padding, padding), (padding, padding)))
    hp, wp = h + 2 * padding, w + 2 * padding
    ho = (hp - kh) // stride + 1
    wo = (wp - kw) // stride + 1
    taps = jnp.stack(
        [xp[:, :, dy:dy + stride * ho:stride, dx:dx + stride * wo:stride]
         for dy in range(kh) for dx in range(kw)],
        axis=0)                                   # (KH*KW, C_in, N, Ho, Wo)
    patches = taps.reshape(kh * kw * c_in, n * ho * wo)   # contiguous reshape only
    return patches, (n, ho, wo)


def conv_relu_bn_stats(x_cnhw, w_hwio, b, *, stride, padding,
                       tm=1024, matmul_dtype=jnp.float32):
    """Conv2d(+bias) -> ReLU, plus per-channel batch mean/var of the result.

    Returns (y_cm, (n, ho, wo), mean, var); y_cm is the UNnormalized (C_out, M)
    activation.  The BN affine is applied by the caller (fused by XLA into the
    next layer's im2col glue or the final output transpose).
    """
    kh, kw, c_in, c_out = w_hwio.shape
    patches, (n, ho, wo) = _im2col_cnhw(x_cnhw, kh, kw, stride, padding, matmul_dtype)
    k_dim, m = patches.shape

    tm = min(max(128, int(tm)), _round_up(m, 128))
    num_tiles = pl.cdiv(m, tm)
    m_pad = num_tiles * tm
    if m_pad != m:
        patches = jnp.pad(patches, ((0, 0), (0, m_pad - m)))

    w_t = w_hwio.reshape(k_dim, c_out).T.astype(matmul_dtype)   # (C_out, K), same K order
    b2 = b.reshape(c_out, 1).astype(jnp.float32)

    # Explicit VMEM budget (double-buffered tiles) so large TM compiles on v7x's
    # 64 MiB as well as v5e/v6e.  (Weights/bias use constant index maps; with
    # multi-MB weights consider pipeline_mode=pl.Buffered(1) on those specs.)
    in_item = jnp.dtype(matmul_dtype).itemsize
    tile_bytes = (2 * k_dim * tm * in_item              # patches tiles
                  + 2 * c_out * tm * in_item            # y tiles
                  + 2 * c_out * (k_dim * in_item + 4)   # resident weights + bias
                  + 2 * 2 * c_out * 4)                  # stats tiles
    vmem_limit = int(min(max(2 * tile_bytes + (4 << 20), 16 << 20), 48 << 20))

    cost = pl.CostEstimate(
        flops=2 * m_pad * k_dim * c_out,
        transcendentals=0,
        bytes_accessed=(k_dim * m_pad * in_item + c_out * k_dim * in_item
                        + c_out * m_pad * in_item + num_tiles * 2 * c_out * 4))

    kernel = functools.partial(_conv_relu_stats_kernel,
                               needs_mask=(m_pad != m), tm=tm, m_valid=m)
    y, tile_stats = pl.pallas_call(
        kernel,
        out_shape=(
            jax.ShapeDtypeStruct((c_out, m_pad), matmul_dtype),
            jax.ShapeDtypeStruct((num_tiles, 2, c_out, 1), jnp.float32),
        ),
        grid=(num_tiles,),
        in_specs=[
            pl.BlockSpec((k_dim, tm), lambda i: (0, i)),
            pl.BlockSpec((c_out, k_dim), lambda i: (0, 0)),
            pl.BlockSpec((c_out, 1), lambda i: (0, 0)),
        ],
        out_specs=(
            pl.BlockSpec((c_out, tm), lambda i: (0, i)),
            pl.BlockSpec((1, 2, c_out, 1), lambda i: (i, 0, 0, 0)),
        ),
        compiler_params=pltpu.CompilerParams(
            dimension_semantics=("parallel",),   # M tiles shard across TCs on v7x
            vmem_limit_bytes=vmem_limit),
        cost_estimate=cost,
    )(patches, w_t, b2)

    # Combine the tiny per-tile partials in plain JAX (keeps the M axis "parallel"
    # so megacore sharding cannot corrupt the batch statistics).
    sums = jnp.sum(tile_stats[..., 0], axis=0)          # (2, C_out)
    inv_m = 1.0 / float(m)
    mean = sums[0] * inv_m
    ex2 = sums[1] * inv_m
    # TODO(synk): single-pass E[y^2]-mean^2 can lose accuracy vs two-pass variance
    # when |mean| >> std; the clamp only guards against negative values.
    var = jnp.maximum(ex2 - mean * mean, 0.0)
    return y[:, :m], (n, ho, wo), mean, var


# ---------------------------------------------------------------------------
# Module forward
# ---------------------------------------------------------------------------
def init_conv_block_student_params(key, c_in, c_out, ds=False, additional_layers=0):
    """Deterministic synthetic init mirroring ConvBlockStudent.__init__ shapes."""
    def conv_init(k, ci, co, ks):
        kw_, kb_ = jax.random.split(k)
        bound = 1.0 / (ci * ks * ks) ** 0.5             # PyTorch-style uniform bound
        w = jax.random.uniform(kw_, (ks, ks, ci, co), jnp.float32, -bound, bound)
        b = jax.random.uniform(kb_, (co,), jnp.float32, -bound, bound)
        return w, b

    layers = []
    k0 = 2 if ds else 3
    key, sub = jax.random.split(key)
    w, b = conv_init(sub, c_in, c_out, k0)
    layers.append(dict(w=w, b=b,
                       gamma=jnp.ones((c_out,), jnp.float32),
                       beta=jnp.zeros((c_out,), jnp.float32),
                       stride=2 if ds else 1, padding=0 if ds else 1))
    for _ in range(additional_layers):
        key, sub = jax.random.split(key)
        w, b = conv_init(sub, c_out, c_out, 3)
        layers.append(dict(w=w, b=b,
                           gamma=jnp.ones((c_out,), jnp.float32),
                           beta=jnp.zeros((c_out,), jnp.float32),
                           stride=1, padding=1))
    return layers


def conv_block_student_forward(params, x_nchw, *, tm=1024, matmul_dtype=jnp.float32):
    # TODO(synk): BatchNorm2d running_mean/running_var momentum updates (stateful
    # buffers) are not tracked; forward matches train-mode batch-stat normalization.
    x = jnp.transpose(x_nchw, (1, 0, 2, 3))             # NCHW -> CNHW, once
    scale = shift = None
    for layer in params:
        if scale is not None:
            # Previous layer's BN affine; XLA fuses this FMA into the pad/stack of
            # the next layer's im2col glue (no separate activation round trip).
            x = x * scale[:, None, None, None] + shift[:, None, None, None]
        y_cm, (n, ho, wo), mean, var = conv_relu_bn_stats(
            x, layer["w"], layer["b"], stride=layer["stride"],
            padding=layer["padding"], tm=tm, matmul_dtype=matmul_dtype)
        inv_std = jax.lax.rsqrt(var + BN_EPS)
        scale = layer["gamma"] * inv_std
        shift = layer["beta"] - mean * scale
        x = y_cm.reshape(y_cm.shape[0], n, ho, wo)       # (C_out, N, Ho, Wo), no relayout
    # Final BN affine fuses into the single CNHW -> NCHW output transpose.
    x = x * scale[:, None, None, None] + shift[:, None, None, None]
    return jnp.transpose(x, (1, 0, 2, 3)).astype(jnp.float32)


def _reference_forward(params, x_nchw):
    """Pure-JAX reference (XLA conv) reproducing the PyTorch forward."""
    x = x_nchw
    for layer in params:
        w = jnp.transpose(layer["w"], (3, 2, 0, 1))      # HWIO -> OIHW
        y = jax.lax.conv_general_dilated(
            x, w,
            window_strides=(layer["stride"], layer["stride"]),
            padding=[(layer["padding"], layer["padding"])] * 2,
            dimension_numbers=("NCHW", "OIHW", "NCHW"))
        y = y + layer["b"][None, :, None, None]
        y = jnp.maximum(y, 0.0)
        mean = jnp.mean(y, axis=(0, 2, 3), keepdims=True)
        var = jnp.mean(jnp.square(y - mean), axis=(0, 2, 3), keepdims=True)
        y = (y - mean) * jax.lax.rsqrt(var + BN_EPS)
        x = y * layer["gamma"][None, :, None, None] + layer["beta"][None, :, None, None]
    return x


if __name__ == "__main__":
    key = jax.random.PRNGKey(0)
    kx, kp = jax.random.split(key)
    c_in, c_out = 4, 8
    x = jax.random.normal(kx, (2, c_in, 16, 16), jnp.float32)   # NCHW, like PyTorch

    params = init_conv_block_student_params(kp, c_in, c_out,
                                            ds=False, additional_layers=1)

    fwd = jax.jit(functools.partial(conv_block_student_forward, params))
    out = jax.block_until_ready(fwd(x))

    ref = _reference_forward(params, x)
    assert out.shape == ref.shape == (2, c_out, 16, 16)
    err = float(jnp.max(jnp.abs(out - ref)))
    if err < 1e-3:
        print("KERNEL_OK")
    else:
        print(f"MISMATCH max_abs_err={err}")
</pallas_src>

<mosaic_0001>
module attributes {stable_mosaic.version = 11 : i64} {
  func.func @_conv_relu_stats_kernel(%arg0: i32, %arg1: memref<36x512xf32, #tpu.memory_space<vmem>>, %arg2: memref<8x36xf32, #tpu.memory_space<vmem>>, %arg3: memref<8x1xf32, #tpu.memory_space<vmem>>, %arg4: memref<8x512xf32, #tpu.memory_space<vmem>>, %arg5: memref<1x2x8x1xf32, #tpu.memory_space<vmem>>) attributes {dimension_semantics = [#tpu.dimension_semantics<parallel>], iteration_bounds = array<i64: 1>, scalar_prefetch = 0 : i64, scratch_operands = 0 : i64, tpu.core_type = #tpu.core_type<tc>, window_params = [{transform_indices = @transform_0, window_bounds = array<i64: 36, 512>}, {pipeline_mode = #tpu.pipeline_mode<synchronous>, transform_indices = @transform_1, window_bounds = array<i64: 8, 36>}, {pipeline_mode = #tpu.pipeline_mode<synchronous>, transform_indices = @transform_2, window_bounds = array<i64: 8, 1>}, {transform_indices = @transform_3, window_bounds = array<i64: 8, 512>}, {transform_indices = @transform_4, window_bounds = array<i64: 1, 2, 8, 1>}]} {
    %c0 = arith.constant 0 : index
    %c0_0 = arith.constant 0 : index
    %0 = vector.load %arg2[%c0, %c0_0] : memref<8x36xf32, #tpu.memory_space<vmem>>, vector<8x36xf32>
    %c0_1 = arith.constant 0 : index
    %c0_2 = arith.constant 0 : index
    %1 = vector.load %arg1[%c0_1, %c0_2] : memref<36x512xf32, #tpu.memory_space<vmem>>, vector<36x512xf32>
    %cst = arith.constant dense<0.000000e+00> : vector<8x512xf32>
    %2 = tpu.matmul %0, %1, %cst {dimension_numbers = #tpu.dot_dimension_numbers<[1], [0], [0], [1], [0, 0, 1, 1], [], []>} : vector<8x36xf32>, vector<36x512xf32>, vector<8x512xf32> -> vector<8x512xf32>
    %c0_3 = arith.constant 0 : index
    %c0_4 = arith.constant 0 : index
    %3 = vector.load %arg3[%c0_3, %c0_4] : memref<8x1xf32, #tpu.memory_space<vmem>>, vector<8x1xf32>
    %4 = vector.broadcast %3 : vector<8x1xf32> to vector<8x512xf32>
    %5 = arith.addf %2, %4 : vector<8x512xf32>
    %cst_5 = arith.constant 0.000000e+00 : f32
    %6 = vector.broadcast %cst_5 : f32 to vector<8x512xf32>
    %7 = arith.maximumf %5, %6 : vector<8x512xf32>
    %c0_6 = arith.constant 0 : index
    %c0_7 = arith.constant 0 : index
    %8 = vector.load %arg4[%c0_6, %c0_7] : memref<8x512xf32, #tpu.memory_space<vmem>>, vector<8x512xf32>
    tpu.vector_store %arg4[%c0_6, %c0_7], %7 {strides = array<i32>} : memref<8x512xf32, #tpu.memory_space<vmem>>, vector<8x512xf32>,
    %cst_8 = arith.constant dense<0.000000e+00> : vector<8xf32>
    %9 = vector.multi_reduction <add>, %7, %cst_8 [1] : vector<8x512xf32> to vector<8xf32>
    %10 = vector.shape_cast %9 : vector<8xf32> to vector<8x1xf32>
    %c0_9 = arith.constant 0 : index
    %c0_10 = arith.constant 0 : index
    %c0_11 = arith.constant 0 : index
    %c0_12 = arith.constant 0 : index
    %11 = vector.load %arg5[%c0_9, %c0_10, %c0_11, %c0_12] : memref<1x2x8x1xf32, #tpu.memory_space<vmem>>, vector<1x1x8x1xf32>
    %12 = vector.shape_cast %11 : vector<1x1x8x1xf32> to vector<8x1xf32>
    %13 = vector.shape_cast %10 : vector<8x1xf32> to vector<1x1x8x1xf32>
    tpu.vector_store %arg5[%c0_9, %c0_10, %c0_11, %c0_12], %13 {strides = array<i32>} : memref<1x2x8x1xf32, #tpu.memory_space<vmem>>, vector<1x1x8x1xf32>,
    %14 = arith.mulf %7, %7 : vector<8x512xf32>
    %cst_13 = arith.constant dense<0.000000e+00> : vector<8xf32>
    %15 = vector.multi_reduction <add>, %14, %cst_13 [1] : vector<8x512xf32> to vector<8xf32>
    %16 = vector.shape_cast %15 : vector<8xf32> to vector<8x1xf32>
    %c0_14 = arith.constant 0 : index
    %c1 = arith.constant 1 : index
    %c0_15 = arith.constant 0 : index
    %c0_16 = arith.constant 0 : index
    %17 = vector.load %arg5[%c0_14, %c1, %c0_15, %c0_16] : memref<1x2x8x1xf32, #tpu.memory_space<vmem>>, vector<1x1x8x1xf32>
    %18 = vector.shape_cast %17 : vector<1x1x8x1xf32> to vector<8x1xf32>
    %19 = vector.shape_cast %16 : vector<8x1xf32> to vector<1x1x8x1xf32>
    tpu.vector_store %arg5[%c0_14, %c1, %c0_15, %c0_16], %19 {strides = array<i32>} : memref<1x2x8x1xf32, #tpu.memory_space<vmem>>, vector<1x1x8x1xf32>,
    return
  }
  func.func @transform_0(%arg0: i32) -> (i32, i32) {
    %c0_i32 = arith.constant 0 : i32
    %c0_i32_0 = arith.constant 0 : i32
    return %c0_i32, %arg0 : i32, i32
  }
  func.func @transform_1(%arg0: i32) -> (i32, i32) {
    %c0_i32 = arith.constant 0 : i32
    %c0_i32_0 = arith.constant 0 : i32
    %c0_i32_1 = arith.constant 0 : i32
    return %c0_i32, %c0_i32_0 : i32, i32
  }
  func.func @transform_2(%arg0: i32) -> (i32, i32) {
    %c0_i32 = arith.constant 0 : i32
    %c0_i32_0 = arith.constant 0 : i32
    %c0_i32_1 = arith.constant 0 : i32
    return %c0_i32, %c0_i32_0 : i32, i32
  }
  func.func @transform_3(%arg0: i32) -> (i32, i32) {
    %c0_i32 = arith.constant 0 : i32
    %c0_i32_0 = arith.constant 0 : i32
    return %c0_i32, %arg0 : i32, i32
  }
  func.func @transform_4(%arg0: i32) -> (i32, i32, i32, i32) {
    %c0_i32 = arith.constant 0 : i32
    %c0_i32_0 = arith.constant 0 : i32
    %c0_i32_1 = arith.constant 0 : i32
    %c0_i32_2 = arith.constant 0 : i32
    return %arg0, %c0_i32, %c0_i32_0, %c0_i32_1 : i32, i32, i32, i32
  }
}

module attributes {stable_mosaic.version = 11 : i64} {
  func.func @_conv_relu_stats_kernel(%arg0: i32, %arg1: memref<72x512xf32, #tpu.memory_space<vmem>>, %arg2: memref<8x72xf32, #tpu.memory_space<vmem>>, %arg3: memref<8x1xf32, #tpu.memory_space<vmem>>, %arg4: memref<8x512xf32, #tpu.memory_space<vmem>>, %arg5: memref<1x2x8x1xf32, #tpu.memory_space<vmem>>) attributes {dimension_semantics = [#tpu.dimension_semantics<parallel>], iteration_bounds = array<i64: 1>, scalar_prefetch = 0 : i64, scratch_operands = 0 : i64, tpu.core_type = #tpu.core_type<tc>, window_params = [{transform_indices = @transform_0, window_bounds = array<i64: 72, 512>}, {pipeline_mode = #tpu.pipeline_mode<synchronous>, transform_indices = @transform_1, window_bounds = array<i64: 8, 72>}, {pipeline_mode = #tpu.pipeline_mode<synchronous>, transform_indices = @transform_2, window_bounds = array<i64: 8, 1>}, {transform_indices = @transform_3, window_bounds = array<i64: 8, 512>}, {transform_indices = @transform_4, window_bounds = array<i64: 1, 2, 8, 1>}]} {
    %c0 = arith.constant 0 : index
    %c0_0 = arith.constant 0 : index
    %0 = vector.load %arg2[%c0, %c0_0] : memref<8x72xf32, #tpu.memory_space<vmem>>, vector<8x72xf32>
    %c0_1 = arith.constant 0 : index
    %c0_2 = arith.constant 0 : index
    %1 = vector.load %arg1[%c0_1, %c0_2] : memref<72x512xf32, #tpu.memory_space<vmem>>, vector<72x512xf32>
    %cst = arith.constant dense<0.000000e+00> : vector<8x512xf32>
    %2 = tpu.matmul %0, %1, %cst {dimension_numbers = #tpu.dot_dimension_numbers<[1], [0], [0], [1], [0, 0, 1, 1], [], []>} : vector<8x72xf32>, vector<72x512xf32>, vector<8x512xf32> -> vector<8x512xf32>
    %c0_3 = arith.constant 0 : index
    %c0_4 = arith.constant 0 : index
    %3 = vector.load %arg3[%c0_3, %c0_4] : memref<8x1xf32, #tpu.memory_space<vmem>>, vector<8x1xf32>
    %4 = vector.broadcast %3 : vector<8x1xf32> to vector<8x512xf32>
    %5 = arith.addf %2, %4 : vector<8x512xf32>
    %cst_5 = arith.constant 0.000000e+00 : f32
    %6 = vector.broadcast %cst_5 : f32 to vector<8x512xf32>
    %7 = arith.maximumf %5, %6 : vector<8x512xf32>
    %c0_6 = arith.constant 0 : index
    %c0_7 = arith.constant 0 : index
    %8 = vector.load %arg4[%c0_6, %c0_7] : memref<8x512xf32, #tpu.memory_space<vmem>>, vector<8x512xf32>
    tpu.vector_store %arg4[%c0_6, %c0_7], %7 {strides = array<i32>} : memref<8x512xf32, #tpu.memory_space<vmem>>, vector<8x512xf32>,
    %cst_8 = arith.constant dense<0.000000e+00> : vector<8xf32>
    %9 = vector.multi_reduction <add>, %7, %cst_8 [1] : vector<8x512xf32> to vector<8xf32>
    %10 = vector.shape_cast %9 : vector<8xf32> to vector<8x1xf32>
    %c0_9 = arith.constant 0 : index
    %c0_10 = arith.constant 0 : index
    %c0_11 = arith.constant 0 : index
    %c0_12 = arith.constant 0 : index
    %11 = vector.load %arg5[%c0_9, %c0_10, %c0_11, %c0_12] : memref<1x2x8x1xf32, #tpu.memory_space<vmem>>, vector<1x1x8x1xf32>
    %12 = vector.shape_cast %11 : vector<1x1x8x1xf32> to vector<8x1xf32>
    %13 = vector.shape_cast %10 : vector<8x1xf32> to vector<1x1x8x1xf32>
    tpu.vector_store %arg5[%c0_9, %c0_10, %c0_11, %c0_12], %13 {strides = array<i32>} : memref<1x2x8x1xf32, #tpu.memory_space<vmem>>, vector<1x1x8x1xf32>,
    %14 = arith.mulf %7, %7 : vector<8x512xf32>
    %cst_13 = arith.constant dense<0.000000e+00> : vector<8xf32>
    %15 = vector.multi_reduction <add>, %14, %cst_13 [1] : vector<8x512xf32> to vector<8xf32>
    %16 = vector.shape_cast %15 : vector<8xf32> to vector<8x1xf32>
    %c0_14 = arith.constant 0 : index
    %c1 = arith.constant 1 : index
    %c0_15 = arith.constant 0 : index
    %c0_16 = arith.constant 0 : index
    %17 = vector.load %arg5[%c0_14, %c1, %c0_15, %c0_16] : memref<1x2x8x1xf32, #tpu.memory_space<vmem>>, vector<1x1x8x1xf32>
    %18 = vector.shape_cast %17 : vector<1x1x8x1xf32> to vector<8x1xf32>
    %19 = vector.shape_cast %16 : vector<8x1xf32> to vector<1x1x8x1xf32>
    tpu.vector_store %arg5[%c0_14, %c1, %c0_15, %c0_16], %19 {strides = array<i32>} : memref<1x2x8x1xf32, #tpu.memory_space<vmem>>, vector<1x1x8x1xf32>,
    return
  }
  func.func @transform_0(%arg0: i32) -> (i32, i32) {
    %c0_i32 = arith.constant 0 : i32
    %c0_i32_0 = arith.constant 0 : i32
    return %c0_i32, %arg0 : i32, i32
  }
  func.func @transform_1(%arg0: i32) -> (i32, i32) {
    %c0_i32 = arith.constant 0 : i32
    %c0_i32_0 = arith.constant 0 : i32
    %c0_i32_1 = arith.constant 0 : i32
    return %c0_i32, %c0_i32_0 : i32, i32
  }
  func.func @transform_2(%arg0: i32) -> (i32, i32) {
    %c0_i32 = arith.constant 0 : i32
    %c0_i32_0 = arith.constant 0 : i32
    %c0_i32_1 = arith.constant 0 : i32
    return %c0_i32, %c0_i32_0 : i32, i32
  }
  func.func @transform_3(%arg0: i32) -> (i32, i32) {
    %c0_i32 = arith.constant 0 : i32
    %c0_i32_0 = arith.constant 0 : i32
    return %c0_i32, %arg0 : i32, i32
  }
  func.func @transform_4(%arg0: i32) -> (i32, i32, i32, i32) {
    %c0_i32 = arith.constant 0 : i32
    %c0_i32_0 = arith.constant 0 : i32
    %c0_i32_1 = arith.constant 0 : i32
    %c0_i32_2 = arith.constant 0 : i32
    return %arg0, %c0_i32, %c0_i32_0, %c0_i32_1 : i32, i32, i32, i32
  }
}

</mosaic_0001>

<llo_original>
// kernel: conv_block_student_forward.2
$region0: #{conv_block_student_forward.2}
  #allocation0 [shape = 'u32[]', space=smem, size = 0x4, offset = 0x4, fixed_abs, tag = 'smem constant byte address 0x4 - core index']
  #allocation1 [shape = 'u32[144,128]{1,0:T(1,128)}', space=vmem, size = 0x12000, scoped, tag = 'internal scratch']
  %s0 = inlined_call_operand.vmem [shape: f32[36,512], index: 0, kind: input, shape index: {}]
  %s1 = inlined_call_operand.vmem [shape: f32[8,36], index: 1, kind: input, shape index: {}]
  %s2 = inlined_call_operand.vmem [shape: f32[8,1], index: 2, kind: input, shape index: {}]
  %s3 = inlined_call_operand.vmem [shape: f32[8,512], index: 3, kind: output, shape index: {0}]
  %s4 = inlined_call_operand.vmem [shape: f32[1,2,8,1], index: 4, kind: output, shape index: {1}]
  %5 = xla_tuple %s3, %s4
  %s6 = sld [smem:[#allocation0]]
  $region30: #{conv_block_student_forward.2} parent=0
    _
  %s8 = ssub.s32 1, %s6
  %s9 = scalar_select 0, %s8, %s6
  // Predicated region
  $region2: #{conv_block_student_forward.2} parent=0 // pred_check
    _
  $region3: #{conv_block_student_forward.2} parent=0 // pred_check_branch
    %11 = sbr.rel (0) target = $region5
  $region4: #{conv_block_student_forward.2} parent=0 // pred_region
    _
  $region5: #{conv_block_student_forward.2} parent=0 // pred_fallthru
    _
  // Predicated region
  $region6: #{conv_block_student_forward.2} parent=0 // pred_check
    _
  $region7: #{conv_block_student_forward.2} parent=0 // pred_check_branch
    %13 = sbr.rel (0) target = $region9
  $region8: #{conv_block_student_forward.2} parent=0 // pred_region
    _
  $region9: #{conv_block_student_forward.2} parent=0 // pred_fallthru
    _
  // Predicated region
  $region10: #{conv_block_student_forward.2} parent=0 // pred_check
    _
  $region11: #{conv_block_student_forward.2} parent=0 // pred_check_branch
    %15 = sbr.rel (0) target = $region13
  $region12: #{conv_block_student_forward.2} parent=0 // pred_region
    _
  $region13: #{conv_block_student_forward.2} parent=0 // pred_fallthru
    _
  %v16 = vld [vmem:[%s1] sm:$0xff]
  %v17 = vld [vmem:[%s0] sm:$0xff]
  %v18 = vld [vmem:[%s0 + $0x8] sm:$0xff]
  %v19 = vld [vmem:[%s0 + $0x10] sm:$0xff]
  %v20 = vld [vmem:[%s0 + $0x18] sm:$0xff]
  %v21 = vld [vmem:[%s0 + $0x20] sm:$0xff]
  %v22 = vld [vmem:[%s0 + $0x28] sm:$0xff]
  %v23 = vld [vmem:[%s0 + $0x30] sm:$0xff]
  %v24 = vld [vmem:[%s0 + $0x38] sm:$0xff]
  %v25 = vld [vmem:[%s0 + $0x40] sm:$0xff]
  %v26 = vld [vmem:[%s0 + $0x48] sm:$0xff]
  %v27 = vld [vmem:[%s0 + $0x50] sm:$0xff]
  %v28 = vld [vmem:[%s0 + $0x58] sm:$0xff]
  %v29 = vld [vmem:[%s0 + $0x60] sm:$0xff]
  %v30 = vld [vmem:[%s0 + $0x68] sm:$0xff]
  %v31 = vld [vmem:[%s0 + $0x70] sm:$0xff]
  %v32 = vld [vmem:[%s0 + $0x78] sm:$0xff]
  %v33 = vld [vmem:[%s0 + $0x80] sm:$0xf]
  %v34 = vld [vmem:[%s0 + $0x88] sm:$0xf]
  %v35 = vld [vmem:[%s0 + $0x90] sm:$0xf]
  %v36 = vld [vmem:[%s0 + $0x98] sm:$0xf]
  %v37 = vld [vmem:[%s2] sm:$0xff]
  %39 = vset.pattern.permute.xlu0 0
  %40 = vperm.xlu0 %39, %v37
  %v41 = vpop.permute.xlu0 %40
  %vm43 = vcmask 293888
  %v45 = vsel %vm43, %v16, 0
  %vm47 = vcmask 1043456
  %v49 = vsel %vm47, %v33, 0
  %v52 = vsel %vm47, %v34, 0
  %v55 = vsel %vm47, %v35, 0
  %v58 = vsel %vm47, %v36, 0
  %60 = vmatprep.subr.mxu0 0.0
  %61 = vmatpush1.msra.mxu0 0.0
  %62 = vmatprep.subr.mxu0 0.0
  %63 = vmatpush1.msra.mxu0 0.0
  %64 = vmatprep.subr.mxu0 0.0
  %65 = vmatpush1.msra.mxu0 0.0
  %66 = vmatprep.subr.mxu0 0.0
  %67 = vmatpush1.msra.mxu0 0.0
  %68 = vmatprep.subr.mxu0 0.0
  %69 = vmatpush1.msra.mxu0 0.0
  %70 = vmatprep.subr.mxu0 0.0
  %71 = vmatpush1.msra.mxu0 0.0
  %72 = vmatprep.subr.mxu0 0.0
  %73 = vmatpush1.msra.mxu0 0.0
  %74 = vmatprep.subr.mxu0 0.0
  %75 = vmatpush1.msra.mxu0 0.0
  %76 = vmatprep.subr.mxu0 0.0
  %77 = vmatpush1.msra.mxu0 0.0
  %78 = vmatprep.subr.mxu0 0.0
  %79 = vmatpush1.msra.mxu0 0.0
  %80 = vmatprep.subr.mxu0 0.0
  %81 = vmatpush1.msra.mxu0 0.0
  %82 = vmatprep.subr.mxu0 %v52
  %83 = vmatpush1.msra.mxu0 %v49
  %84 = vmatprep.subr.mxu0 %v30
  %85 = vmatpush1.msra.mxu0 %v29
  %86 = vmatprep.subr.mxu0 %v26
  %87 = vmatpush1.msra.mxu0 %v25
  %88 = vmatprep.subr.mxu0 %v22
  %89 = vmatpush1.msra.mxu0 %v21
  %90 = vmatprep.subr.mxu0 %v18
  %91 = vmatpush1.msra.mxu0 %v17
  %92 = vmatprep.subr.mxu0 0.0
  %93 = vmatpush2.msra.mxu0 0.0
  %94 = vmatprep.subr.mxu0 0.0
  %95 = vmatpush2.msra.mxu0 0.0
  %96 = vmatprep.subr.mxu0 0.0
  %97 = vmatpush2.msra.mxu0 0.0
  %98 = vmatprep.subr.mxu0 0.0
  %99 = vmatpush2.msra.mxu0 0.0
  %100 = vmatprep.subr.mxu0 0.0
  %101 = vmatpush2.msra.mxu0 0.0
  %102 = vmatprep.subr.mxu0 0.0
  %103 = vmatpush2.msra.mxu0 0.0
  %104 = vmatprep.subr.mxu0 0.0
  %105 = vmatpush2.msra.mxu0 0.0
  %106 = vmatprep.subr.mxu0 0.0
  %107 = vmatpush2.msra.mxu0 0.0
  %108 = vmatprep.subr.mxu0 0.0
  %109 = vmatpush2.msra.mxu0 0.0
  %110 = vmatprep.subr.mxu0 0.0
  %111 = vmatpush2.msra.mxu0 0.0
  %112 = vmatprep.subr.mxu0 0.0
  %113 = vmatpush2.msra.mxu0 0.0
  %114 = vmatprep.subr.mxu0 0.0
  %115 = vmatpush2.msra.mxu0 0.0
  %116 = vmatprep.subr.mxu0 0.0
  %117 = vmatpush2.msra.mxu0 0.0
  %118 = vmatprep.subr.mxu0 0.0
  %119 = vmatpush2.msra.mxu0 0.0
  %120 = vmatprep.subr.mxu0 0.0
  %121 = vmatpush2.msra.mxu0 0.0
  %122 = vmatprep.subr.mxu0 0.0
  %123 = vmatpush2.msra.mxu0 0.0
  %124 = vmatprep.mubr.f32.mxu0 0.0
  %125 = vmatmul.mubr.f32.gmra.mxu0 %v45
  %v126 = vpop.f32.mrf.mxu0
  %v127 = vadd.f32 %v41, %v126
  %v128 = vpop.f32.mrf.mxu0
  %v129 = vadd.f32 %v41, %v128
  %130 = vdwg.mxu0
  %131 = vmatprep.subr.mxu0 0.0
  %132 = vmatpush1.msra.mxu0 0.0
  %133 = vmatprep.subr.mxu0 0.0
  %134 = vmatpush1.msra.mxu0 0.0
  %135 = vmatprep.subr.mxu0 0.0
  %136 = vmatpush1.msra.mxu0 0.0
  %137 = vmatprep.subr.mxu0 0.0
  %138 = vmatpush1.msra.mxu0 0.0
  %139 = vmatprep.subr.mxu0 0.0
  %140 = vmatpush1.msra.mxu0 0.0
  %141 = vmatprep.subr.mxu0 0.0
  %142 = vmatpush1.msra.mxu0 0.0
  %143 = vmatprep.subr.mxu0 0.0
  %144 = vmatpush1.msra.mxu0 0.0
  %145 = vmatprep.subr.mxu0 0.0
  %146 = vmatpush1.msra.mxu0 0.0
  %147 = vmatprep.subr.mxu0 0.0
  %148 = vmatpush1.msra.mxu0 0.0
  %149 = vmatprep.subr.mxu0 0.0
  %150 = vmatpush1.msra.mxu0 0.0
  %151 = vmatprep.subr.mxu0 0.0
  %152 = vmatpush1.msra.mxu0 0.0
  %153 = vmatprep.subr.mxu0 %v58
  %154 = vmatpush1.msra.mxu0 %v55
  %155 = vmatprep.subr.mxu0 %v32
  %156 = vmatpush1.msra.mxu0 %v31
  %157 = vmatprep.subr.mxu0 %v28
  %158 = vmatpush1.msra.mxu0 %v27
  %159 = vmatprep.subr.mxu0 %v24
  %160 = vmatpush1.msra.mxu0 %v23
  %161 = vmatprep.subr.mxu0 %v20
  %162 = vmatpush1.msra.mxu0 %v19
  %163 = vmatprep.subr.mxu0 0.0
  %164 = vmatpush2.msra.mxu0 0.0
  %165 = vmatprep.subr.mxu0 0.0
  %166 = vmatpush2.msra.mxu0 0.0
  %167 = vmatprep.subr.mxu0 0.0
  %168 = vmatpush2.msra.mxu0 0.0
  %169 = vmatprep.subr.mxu0 0.0
  %170 = vmatpush2.msra.mxu0 0.0
  %171 = vmatprep.subr.mxu0 0.0
  %172 = vmatpush2.msra.mxu0 0.0
  %173 = vmatprep.subr.mxu0 0.0
  %174 = vmatpush2.msra.mxu0 0.0
  %175 = vmatprep.subr.mxu0 0.0
  %176 = vmatpush2.msra.mxu0 0.0
  %177 = vmatprep.subr.mxu0 0.0
  %178 = vmatpush2.msra.mxu0 0.0
  %179 = vmatprep.subr.mxu0 0.0
  %180 = vmatpush2.msra.mxu0 0.0
  %181 = vmatprep.subr.mxu0 0.0
  %182 = vmatpush2.msra.mxu0 0.0
  %183 = vmatprep.subr.mxu0 0.0
  %184 = vmatpush2.msra.mxu0 0.0
  %185 = vmatprep.subr.mxu0 0.0
  %186 = vmatpush2.msra.mxu0 0.0
  %187 = vmatprep.subr.mxu0 0.0
  %188 = vmatpush2.msra.mxu0 0.0
  %189 = vmatprep.subr.mxu0 0.0
  %190 = vmatpush2.msra.mxu0 0.0
  %191 = vmatprep.subr.mxu0 0.0
  %192 = vmatpush2.msra.mxu0 0.0
  %193 = vmatprep.subr.mxu0 0.0
  %194 = vmatpush2.msra.mxu0 0.0
  %195 = vmatprep.mubr.f32.mxu0 0.0
  %196 = vmatmul.mubr.f32.gmra.mxu0 %v45
  %v197 = vpop.f32.mrf.mxu0
  %v198 = vadd.f32 %v41, %v197
  %v199 = vpop.f32.mrf.mxu0
  %v200 = vadd.f32 %v41, %v199
  %201 = vdwg.mxu0
  %v202 = vmax.f32 %v127, 0.0
  %v203 = vmax.f32 %v129, 0.0
  %v204 = vmax.f32 %v198, 0.0
  %v205 = vmax.f32 %v200, 0.0
  %206 = vst [vmem:[%s3] sm:$0xff] %v202
  %207 = vst [vmem:[%s3 + $0x8] sm:$0xff] %v203
  %208 = vst [vmem:[%s3 + $0x10] sm:$0xff] %v204
  %209 = vst [vmem:[%s3 + $0x18] sm:$0xff] %v205
  %v210 = vadd.f32 %v202, %v203
  %v211 = vadd.f32 %v210, %v204
  %v212 = vadd.f32 %v211, %v205
  %213 = vadd.xlane.f32.xlu0 %v212
  %v214 = vpop.xlane.xlu0 %213
  %vm215 = vcmask 7168
  %216 = vst.msk [vmem:[%s4] sm:$0xff] %vm215, %v214
  %v217 = vmul.f32 %v202, %v202
  %v218 = vmul.f32 %v203, %v203
  %v219 = vmul.f32 %v204, %v204
  %v220 = vmul.f32 %v205, %v205
  %v221 = vadd.f32 %v217, %v218
  %v222 = vadd.f32 %v221, %v219
  %v223 = vadd.f32 %v222, %v220
  %224 = vadd.xlane.f32.xlu0 %v223
  %v225 = vpop.xlane.xlu0 %224
  %s226 = scalar_lea.vmem %s4, 8
  %227 = vst.msk [vmem:[%s226] sm:$0xff] %vm215, %v225
  // Predicated region
  $region14: #{conv_block_student_forward.2} parent=0 // pred_check
    _
  $region15: #{conv_block_student_forward.2} parent=0 // pred_check_branch
    %229 = sbr.rel (0) target = $region17
  $region16: #{conv_block_student_forward.2} parent=0 // pred_region
    _
  $region17: #{conv_block_student_forward.2} parent=0 // pred_fallthru
    _
  // Predicated region
  $region18: #{conv_block_student_forward.2} parent=0 // pred_check
    _
  $region19: #{conv_block_student_forward.2} parent=0 // pred_check_branch
    %231 = sbr.rel (0) target = $region21
  $region20: #{conv_block_student_forward.2} parent=0 // pred_region
    _
  $region21: #{conv_block_student_forward.2} parent=0 // pred_fallthru
    _
  // Predicated region
  $region22: #{conv_block_student_forward.2} parent=0 // pred_check
    _
  $region23: #{conv_block_student_forward.2} parent=0 // pred_check_branch
    %233 = sbr.rel (0) target = $region25
  $region24: #{conv_block_student_forward.2} parent=0 // pred_region
    _
  $region25: #{conv_block_student_forward.2} parent=0 // pred_fallthru
    _
  // Predicated region
  $region26: #{conv_block_student_forward.2} parent=0 // pred_check
    _
  $region27: #{conv_block_student_forward.2} parent=0 // pred_check_branch
    %235 = sbr.rel (0) target = $region29
  $region28: #{conv_block_student_forward.2} parent=0 // pred_region
    _
  $region29: #{conv_block_student_forward.2} parent=0 // pred_fallthru
    _

// kernel: conv_block_student_forward.3
$region0: #{conv_block_student_forward.3}
  #allocation0 [shape = 'u32[]', space=smem, size = 0x4, offset = 0x4, fixed_abs, tag = 'smem constant byte address 0x4 - core index']
  #allocation1 [shape = 'u32[144,128]{1,0:T(1,128)}', space=vmem, size = 0x12000, scoped, tag = 'internal scratch']
  %s0 = inlined_call_operand.vmem [shape: f32[72,512], index: 0, kind: input, shape index: {}]
  %s1 = inlined_call_operand.vmem [shape: f32[8,72], index: 1, kind: input, shape index: {}]
  %s2 = inlined_call_operand.vmem [shape: f32[8,1], index: 2, kind: input, shape index: {}]
  %s3 = inlined_call_operand.vmem [shape: f32[8,512], index: 3, kind: output, shape index: {0}]
  %s4 = inlined_call_operand.vmem [shape: f32[1,2,8,1], index: 4, kind: output, shape index: {1}]
  %5 = xla_tuple %s3, %s4
  %s6 = sld [smem:[#allocation0]]
  $region30: #{conv_block_student_forward.3} parent=0
    _
  %s8 = ssub.s32 1, %s6
  %s9 = scalar_select 0, %s8, %s6
  // Predicated region
  $region2: #{conv_block_student_forward.3} parent=0 // pred_check
    _
  $region3: #{conv_block_student_forward.3} parent=0 // pred_check_branch
    %11 = sbr.rel (0) target = $region5
  $region4: #{conv_block_student_forward.3} parent=0 // pred_region
    _
  $region5: #{conv_block_student_forward.3} parent=0 // pred_fallthru
    _
  // Predicated region
  $region6: #{conv_block_student_forward.3} parent=0 // pred_check
    _
  $region7: #{conv_block_student_forward.3} parent=0 // pred_check_branch
    %13 = sbr.rel (0) target = $region9
  $region8: #{conv_block_student_forward.3} parent=0 // pred_region
    _
  $region9: #{conv_block_student_forward.3} parent=0 // pred_fallthru
    _
  // Predicated region
  $region10: #{conv_block_student_forward.3} parent=0 // pred_check
    _
  $region11: #{conv_block_student_forward.3} parent=0 // pred_check_branch
    %15 = sbr.rel (0) target = $region13
  $region12: #{conv_block_student_forward.3} parent=0 // pred_region
    _
  $region13: #{conv_block_student_forward.3} parent=0 // pred_fallthru
    _
  %v16 = vld [vmem:[%s1] sm:$0xff]
  %v17 = vld [vmem:[%s0] sm:$0xff]
  %v18 = vld [vmem:[%s0 + $0x8] sm:$0xff]
  %v19 = vld [vmem:[%s0 + $0x10] sm:$0xff]
  %v20 = vld [vmem:[%s0 + $0x18] sm:$0xff]
  %v21 = vld [vmem:[%s0 + $0x20] sm:$0xff]
  %v22 = vld [vmem:[%s0 + $0x28] sm:$0xff]
  %v23 = vld [vmem:[%s0 + $0x30] sm:$0xff]
  %v24 = vld [vmem:[%s0 + $0x38] sm:$0xff]
  %v25 = vld [vmem:[%s0 + $0x40] sm:$0xff]
  %v26 = vld [vmem:[%s0 + $0x48] sm:$0xff]
  %v27 = vld [vmem:[%s0 + $0x50] sm:$0xff]
  %v28 = vld [vmem:[%s0 + $0x58] sm:$0xff]
  %v29 = vld [vmem:[%s0 + $0x60] sm:$0xff]
  %v30 = vld [vmem:[%s0 + $0x68] sm:$0xff]
  %v31 = vld [vmem:[%s0 + $0x70] sm:$0xff]
  %v32 = vld [vmem:[%s0 + $0x78] sm:$0xff]
  %v33 = vld [vmem:[%s0 + $0x80] sm:$0xff]
  %v34 = vld [vmem:[%s0 + $0x88] sm:$0xff]
  %v35 = vld [vmem:[%s0 + $0x90] sm:$0xff]
  %v36 = vld [vmem:[%s0 + $0x98] sm:$0xff]
  %v37 = vld [vmem:[%s0 + $0xa0] sm:$0xff]
  %v38 = vld [vmem:[%s0 + $0xa8] sm:$0xff]
  %v39 = vld [vmem:[%s0 + $0xb0] sm:$0xff]
  %v40 = vld [vmem:[%s0 + $0xb8] sm:$0xff]
  %v41 = vld [vmem:[%s0 + $0xc0] sm:$0xff]
  %v42 = vld [vmem:[%s0 + $0xc8] sm:$0xff]
  %v43 = vld [vmem:[%s0 + $0xd0] sm:$0xff]
  %v44 = vld [vmem:[%s0 + $0xd8] sm:$0xff]
  %v45 = vld [vmem:[%s0 + $0xe0] sm:$0xff]
  %v46 = vld [vmem:[%s0 + $0xe8] sm:$0xff]
  %v47 = vld [vmem:[%s0 + $0xf0] sm:$0xff]
  %v48 = vld [vmem:[%s0 + $0xf8] sm:$0xff]
  %v49 = vld [vmem:[%s0 + $0x100] sm:$0xff]
  %v50 = vld [vmem:[%s0 + $0x108] sm:$0xff]
  %v51 = vld [vmem:[%s0 + $0x110] sm:$0xff]
  %v52 = vld [vmem:[%s0 + $0x118] sm:$0xff]
  %v53 = vld [vmem:[%s2] sm:$0xff]
  %55 = vset.pattern.permute.xlu0 0
  %56 = vperm.xlu0 %55, %v53
  %v57 = vpop.permute.xlu0 %56
  %vm59 = vcmask 588800
  %v61 = vsel %vm59, %v16, 0
  %63 = vmatprep.subr.mxu0 0.0
  %64 = vmatpush1.msra.mxu0 0.0
  %65 = vmatprep.subr.mxu0 0.0
  %66 = vmatpush1.msra.mxu0 0.0
  %67 = vmatprep.subr.mxu0 0.0
  %68 = vmatpush1.msra.mxu0 0.0
  %69 = vmatprep.subr.mxu0 0.0
  %70 = vmatpush1.msra.mxu0 0.0
  %71 = vmatprep.subr.mxu0 0.0
  %72 = vmatpush1.msra.mxu0 0.0
  %73 = vmatprep.subr.mxu0 0.0
  %74 = vmatpush1.msra.mxu0 0.0
  %75 = vmatprep.subr.mxu0 0.0
  %76 = vmatpush1.msra.mxu0 0.0
  %77 = vmatprep.subr.mxu0 %v50
  %78 = vmatpush1.msra.mxu0 %v49
  %79 = vmatprep.subr.mxu0 %v46
  %80 = vmatpush1.msra.mxu0 %v45
  %81 = vmatprep.subr.mxu0 %v42
  %82 = vmatpush1.msra.mxu0 %v41
  %83 = vmatprep.subr.mxu0 %v38
  %84 = vmatpush1.msra.mxu0 %v37
  %85 = vmatprep.subr.mxu0 %v34
  %86 = vmatpush1.msra.mxu0 %v33
  %87 = vmatprep.subr.mxu0 %v30
  %88 = vmatpush1.msra.mxu0 %v29
  %89 = vmatprep.subr.mxu0 %v26
  %90 = vmatpush1.msra.mxu0 %v25
  %91 = vmatprep.subr.mxu0 %v22
  %92 = vmatpush1.msra.mxu0 %v21
  %93 = vmatprep.subr.mxu0 %v18
  %94 = vmatpush1.msra.mxu0 %v17
  %95 = vmatprep.subr.mxu0 0.0
  %96 = vmatpush2.msra.mxu0 0.0
  %97 = vmatprep.subr.mxu0 0.0
  %98 = vmatpush2.msra.mxu0 0.0
  %99 = vmatprep.subr.mxu0 0.0
  %100 = vmatpush2.msra.mxu0 0.0
  %101 = vmatprep.subr.mxu0 0.0
  %102 = vmatpush2.msra.mxu0 0.0
  %103 = vmatprep.subr.mxu0 0.0
  %104 = vmatpush2.msra.mxu0 0.0
  %105 = vmatprep.subr.mxu0 0.0
  %106 = vmatpush2.msra.mxu0 0.0
  %107 = vmatprep.subr.mxu0 0.0
  %108 = vmatpush2.msra.mxu0 0.0
  %109 = vmatprep.subr.mxu0 0.0
  %110 = vmatpush2.msra.mxu0 0.0
  %111 = vmatprep.subr.mxu0 0.0
  %112 = vmatpush2.msra.mxu0 0.0
  %113 = vmatprep.subr.mxu0 0.0
  %114 = vmatpush2.msra.mxu0 0.0
  %115 = vmatprep.subr.mxu0 0.0
  %116 = vmatpush2.msra.mxu0 0.0
  %117 = vmatprep.subr.mxu0 0.0
  %118 = vmatpush2.msra.mxu0 0.0
  %119 = vmatprep.subr.mxu0 0.0
  %120 = vmatpush2.msra.mxu0 0.0
  %121 = vmatprep.subr.mxu0 0.0
  %122 = vmatpush2.msra.mxu0 0.0
  %123 = vmatprep.subr.mxu0 0.0
  %124 = vmatpush2.msra.mxu0 0.0
  %125 = vmatprep.subr.mxu0 0.0
  %126 = vmatpush2.msra.mxu0 0.0
  %127 = vmatprep.mubr.f32.mxu0 0.0
  %128 = vmatmul.mubr.f32.gmra.mxu0 %v61
  %v129 = vpop.f32.mrf.mxu0
  %v130 = vadd.f32 %v57, %v129
  %v131 = vpop.f32.mrf.mxu0
  %v132 = vadd.f32 %v57, %v131
  %133 = vdwg.mxu0
  %134 = vmatprep.subr.mxu0 0.0
  %135 = vmatpush1.msra.mxu0 0.0
  %136 = vmatprep.subr.mxu0 0.0
  %137 = vmatpush1.msra.mxu0 0.0
  %138 = vmatprep.subr.mxu0 0.0
  %139 = vmatpush1.msra.mxu0 0.0
  %140 = vmatprep.subr.mxu0 0.0
  %141 = vmatpush1.msra.mxu0 0.0
  %142 = vmatprep.subr.mxu0 0.0
  %143 = vmatpush1.msra.mxu0 0.0
  %144 = vmatprep.subr.mxu0 0.0
  %145 = vmatpush1.msra.mxu0 0.0
  %146 = vmatprep.subr.mxu0 0.0
  %147 = vmatpush1.msra.mxu0 0.0
  %148 = vmatprep.subr.mxu0 %v52
  %149 = vmatpush1.msra.mxu0 %v51
  %150 = vmatprep.subr.mxu0 %v48
  %151 = vmatpush1.msra.mxu0 %v47
  %152 = vmatprep.subr.mxu0 %v44
  %153 = vmatpush1.msra.mxu0 %v43
  %154 = vmatprep.subr.mxu0 %v40
  %155 = vmatpush1.msra.mxu0 %v39
  %156 = vmatprep.subr.mxu0 %v36
  %157 = vmatpush1.msra.mxu0 %v35
  %158 = vmatprep.subr.mxu0 %v32
  %159 = vmatpush1.msra.mxu0 %v31
  %160 = vmatprep.subr.mxu0 %v28
  %161 = vmatpush1.msra.mxu0 %v27
  %162 = vmatprep.subr.mxu0 %v24
  %163 = vmatpush1.msra.mxu0 %v23
  %164 = vmatprep.subr.mxu0 %v20
  %165 = vmatpush1.msra.mxu0 %v19
  %166 = vmatprep.subr.mxu0 0.0
  %167 = vmatpush2.msra.mxu0 0.0
  %168 = vmatprep.subr.mxu0 0.0
  %169 = vmatpush2.msra.mxu0 0.0
  %170 = vmatprep.subr.mxu0 0.0
  %171 = vmatpush2.msra.mxu0 0.0
  %172 = vmatprep.subr.mxu0 0.0
  %173 = vmatpush2.msra.mxu0 0.0
  %174 = vmatprep.subr.mxu0 0.0
  %175 = vmatpush2.msra.mxu0 0.0
  %176 = vmatprep.subr.mxu0 0.0
  %177 = vmatpush2.msra.mxu0 0.0
  %178 = vmatprep.subr.mxu0 0.0
  %179 = vmatpush2.msra.mxu0 0.0
  %180 = vmatprep.subr.mxu0 0.0
  %181 = vmatpush2.msra.mxu0 0.0
  %182 = vmatprep.subr.mxu0 0.0
  %183 = vmatpush2.msra.mxu0 0.0
  %184 = vmatprep.subr.mxu0 0.0
  %185 = vmatpush2.msra.mxu0 0.0
  %186 = vmatprep.subr.mxu0 0.0
  %187 = vmatpush2.msra.mxu0 0.0
  %188 = vmatprep.subr.mxu0 0.0
  %189 = vmatpush2.msra.mxu0 0.0
  %190 = vmatprep.subr.mxu0 0.0
  %191 = vmatpush2.msra.mxu0 0.0
  %192 = vmatprep.subr.mxu0 0.0
  %193 = vmatpush2.msra.mxu0 0.0
  %194 = vmatprep.subr.mxu0 0.0
  %195 = vmatpush2.msra.mxu0 0.0
  %196 = vmatprep.subr.mxu0 0.0
  %197 = vmatpush2.msra.mxu0 0.0
  %198 = vmatprep.mubr.f32.mxu0 0.0
  %199 = vmatmul.mubr.f32.gmra.mxu0 %v61
  %v200 = vpop.f32.mrf.mxu0
  %v201 = vadd.f32 %v57, %v200
  %v202 = vpop.f32.mrf.mxu0
  %v203 = vadd.f32 %v57, %v202
  %204 = vdwg.mxu0
  %v205 = vmax.f32 %v130, 0.0
  %v206 = vmax.f32 %v132, 0.0
  %v207 = vmax.f32 %v201, 0.0
  %v208 = vmax.f32 %v203, 0.0
  %209 = vst [vmem:[%s3] sm:$0xff] %v205
  %210 = vst [vmem:[%s3 + $0x8] sm:$0xff] %v206
  %211 = vst [vmem:[%s3 + $0x10] sm:$0xff] %v207
  %212 = vst [vmem:[%s3 + $0x18] sm:$0xff] %v208
  %v213 = vadd.f32 %v205, %v206
  %v214 = vadd.f32 %v213, %v207
  %v215 = vadd.f32 %v214, %v208
  %216 = vadd.xlane.f32.xlu0 %v215
  %v217 = vpop.xlane.xlu0 %216
  %vm218 = vcmask 7168
  %219 = vst.msk [vmem:[%s4] sm:$0xff] %vm218, %v217
  %v220 = vmul.f32 %v205, %v205
  %v221 = vmul.f32 %v206, %v206
  %v222 = vmul.f32 %v207, %v207
  %v223 = vmul.f32 %v208, %v208
  %v224 = vadd.f32 %v220, %v221
  %v225 = vadd.f32 %v224, %v222
  %v226 = vadd.f32 %v225, %v223
  %227 = vadd.xlane.f32.xlu0 %v226
  %v228 = vpop.xlane.xlu0 %227
  %s229 = scalar_lea.vmem %s4, 8
  %230 = vst.msk [vmem:[%s229] sm:$0xff] %vm218, %v228
  // Predicated region
  $region14: #{conv_block_student_forward.3} parent=0 // pred_check
    _
  $region15: #{conv_block_student_forward.3} parent=0 // pred_check_branch
    %232 = sbr.rel (0) target = $region17
  $region16: #{conv_block_student_forward.3} parent=0 // pred_region
    _
  $region17: #{conv_block_student_forward.3} parent=0 // pred_fallthru
    _
  // Predicated region
  $region18: #{conv_block_student_forward.3} parent=0 // pred_check
    _
  $region19: #{conv_block_student_forward.3} parent=0 // pred_check_branch
    %234 = sbr.rel (0) target = $region21
  $region20: #{conv_block_student_forward.3} parent=0 // pred_region
    _
  $region21: #{conv_block_student_forward.3} parent=0 // pred_fallthru
    _
  // Predicated region
  $region22: #{conv_block_student_forward.3} parent=0 // pred_check
    _
  $region23: #{conv_block_student_forward.3} parent=0 // pred_check_branch
    %236 = sbr.rel (0) target = $region25
  $region24: #{conv_block_student_forward.3} parent=0 // pred_region
    _
  $region25: #{conv_block_student_forward.3} parent=0 // pred_fallthru
    _
  // Predicated region
  $region26: #{conv_block_student_forward.3} parent=0 // pred_check
    _
  $region27: #{conv_block_student_forward.3} parent=0 // pred_check_branch
    %238 = sbr.rel (0) target = $region29
  $region28: #{conv_block_student_forward.3} parent=0 // pred_region
    _
  $region29: #{conv_block_student_forward.3} parent=0 // pred_fallthru
    _

</llo_original>
